<compile_context>
chip_gen: v7x
topology: tpu7x:2x2x1
jax: 0.10.0
libtpu: 0.0.40
codegen_flags: <defaults>
</compile_context>

<pallas_src>
import jax
import jax.numpy as jnp
from jax.experimental import pallas as pl
from jax.experimental.pallas import tpu as pltpu


def _round_up(x, m):
    return (x + m - 1) // m * m


def _vmem_capacity_bytes():
    """Physical VMEM of the local TPU; conservative 64 MiB (v7x) fallback."""
    try:
        info = pltpu.get_tpu_info()
        cap = getattr(info, "vmem_capacity_bytes", None)
        if cap:
            return int(cap)
    except Exception:
        pass
    return 64 * 1024 * 1024


def _pad_cast_2d(a, rows, cols, dtype):
    """Cast first (so only the target-dtype copy is padded), pad only if needed."""
    a = a.astype(dtype)
    pr, pc = rows - a.shape[0], cols - a.shape[1]
    if pr or pc:
        a = jnp.pad(a, ((0, pr), (0, pc)))
    return a


# ---------------------------------------------------------------------------
# Phase 1: accumulate per-feature sum / sum-of-squares of h = x @ W1.
# Grid (core_split, batch_tiles_per_core, k_tiles); h stays in VMEM only.
# ---------------------------------------------------------------------------
def _stats_kernel(x_ref, w1_ref, s1_ref, s2_ref, acc_ref):
    i = pl.program_id(1)
    k = pl.program_id(2)
    nk = pl.num_programs(2)

    @pl.when(k == 0)
    def _zero_acc():
        acc_ref[...] = jnp.zeros_like(acc_ref)

    # bf16 x bf16 MXU matmul with f32 accumulation.
    acc_ref[...] += jnp.dot(x_ref[...], w1_ref[...],
                            preferred_element_type=jnp.float32)

    @pl.when((i == 0) & (k == 0))
    def _zero_stats():
        s1_ref[...] = jnp.zeros_like(s1_ref)
        s2_ref[...] = jnp.zeros_like(s2_ref)

    @pl.when(k == nk - 1)
    def _accumulate_stats():
        h = acc_ref[...]                      # [tb, h_p] f32, complete K sum
        tb, hp = h.shape
        hs = h.reshape(tb // 8, 8, hp)        # sublane-group partial sums
        # TODO(synk): single-pass E[h^2]-E[h]^2 can cancel if |mean|>>std;
        # switch to a Welford/M2 merge if that regime matters.
        s1_ref[...] += jnp.sum(hs, axis=0)
        s2_ref[...] += jnp.sum(hs * hs, axis=0)


# ---------------------------------------------------------------------------
# Phase 2: recompute h = x @ W1 (K-tiled, f32 acc), apply folded BN
# scale/shift + ReLU in f32, then bf16 MXU matmul with W2.
# ---------------------------------------------------------------------------
def _apply_kernel(scale_ref, shift_ref, x_ref, w1_ref, w2_ref, o_ref, acc_ref):
    k = pl.program_id(1)

    @pl.when(k == 0)
    def _zero_acc():
        acc_ref[...] = jnp.zeros_like(acc_ref)

    acc_ref[...] += jnp.dot(x_ref[...], w1_ref[...],
                            preferred_element_type=jnp.float32)

    @pl.when(k == pl.num_programs(1) - 1)
    def _finalize():
        a = jnp.maximum(acc_ref[...] * scale_ref[...] + shift_ref[...], 0.0)
        o_ref[...] = jnp.dot(a.astype(jnp.bfloat16), w2_ref[...],
                             preferred_element_type=jnp.float32
                             ).astype(o_ref.dtype)


def mlp_forward(x, w1, gamma, beta, w2, *, eps=1e-5,
                batch_tile=None, k_tile=None):
    """x: [B, n_in]; w1: [n_in, H]; gamma/beta: [H] or [1, H]; w2: [H, n_out].

    Weights are stored (in_features, out_features) = torch weight transposed.
    """
    B, n_in = x.shape
    n_hidden = w1.shape[1]
    n_out = w2.shape[1]

    # Generation-aware sizing: 128 MiB-VMEM parts (v5e/v6e) get bigger tiles
    # and a higher scoped-VMEM limit; 64 MiB parts (v7x) stay conservative.
    big_vmem = _vmem_capacity_bytes() >= 96 * 1024 * 1024
    vmem_limit = (100 if big_vmem else 48) * 1024 * 1024
    if batch_tile is None:
        batch_tile = 512 if big_vmem else 256
    if k_tile is None:
        k_tile = 512

    f32, bf16 = jnp.float32, jnp.bfloat16

    # Lane-dense feature padding (multiples of 128).
    h_p = _round_up(n_hidden, 128)
    n_out_p = _round_up(n_out, 128)
    n_in_p = _round_up(n_in, 128)

    # K tile: largest multiple of 128 that divides n_in_p and is <= k_tile
    # (128 always divides, so no extra K padding is ever introduced).
    k_lim = max(128, _round_up(k_tile, 128))
    tk = 128
    for cand in range(k_lim, 0, -128):
        if n_in_p % cand == 0:
            tk = cand
            break
    nk = n_in_p // tk

    # Batch tiling; C = megacore split of the phase-1 stats reduction.
    bt = _round_up(batch_tile, 8)
    tiles_1core = max(1, pl.cdiv(B, bt))
    C = 2 if tiles_1core >= 2 else 1
    num_tiles = _round_up(tiles_1core, C)
    tb = _round_up(pl.cdiv(B, num_tiles), 8)
    b_p = num_tiles * tb
    half = num_tiles // C

    # bf16 MXU operands (cast before padding). gamma/beta stay f32 and are
    # padded with ZEROS so padded hidden lanes fold to exactly 0 after BN.
    xp = _pad_cast_2d(x, b_p, n_in_p, bf16)
    w1p = _pad_cast_2d(w1, n_in_p, h_p, bf16)
    w2p = _pad_cast_2d(w2, h_p, n_out_p, bf16)
    gp = _pad_cast_2d(gamma.reshape(1, -1), 1, h_p, f32)
    bp = _pad_cast_2d(beta.reshape(1, -1), 1, h_p, f32)

    # ---------------- Phase 1: batch statistics of h = x @ W1 --------------
    flops1 = 2 * b_p * n_in_p * h_p
    bytes1 = 2 * (b_p * n_in_p + n_in_p * h_p) + 4 * 2 * (C * 8 * h_p)
    s1, s2 = pl.pallas_call(
        _stats_kernel,
        out_shape=(
            jax.ShapeDtypeStruct((C * 8, h_p), f32),
            jax.ShapeDtypeStruct((C * 8, h_p), f32),
        ),
        grid=(C, half, nk),
        in_specs=[
            pl.BlockSpec((tb, tk), lambda c, i, k: (c * half + i, k)),   # x
            pl.BlockSpec((tk, h_p), lambda c, i, k: (k, 0)),             # W1 K-tile
        ],
        out_specs=(
            pl.BlockSpec((8, h_p), lambda c, i, k: (c, 0)),   # sum   (resident per core)
            pl.BlockSpec((8, h_p), lambda c, i, k: (c, 0)),   # sumsq (resident per core)
        ),
        scratch_shapes=[pltpu.VMEM((tb, h_p), f32)],
        compiler_params=pltpu.CompilerParams(
            dimension_semantics=("parallel", "arbitrary", "arbitrary"),
            vmem_limit_bytes=vmem_limit,
        ),
        cost_estimate=pl.CostEstimate(
            flops=flops1, transcendentals=0, bytes_accessed=bytes1),
    )(xp, w1p)

    # Fold BN + affine into one scale/shift (tiny [1, H] f32 math, done once).
    inv_b = 1.0 / float(B)                               # real batch size
    mean = jnp.sum(s1, axis=0, keepdims=True) * inv_b
    msq = jnp.sum(s2, axis=0, keepdims=True) * inv_b
    var = jnp.maximum(msq - mean * mean, 0.0)            # biased training var
    scale = gp * jax.lax.rsqrt(var + eps)
    shift = bp - mean * scale

    # ---------------- Phase 2: folded BN + ReLU + second matmul ------------
    flops2 = 2 * b_p * n_in_p * h_p + 2 * b_p * h_p * n_out_p + 3 * b_p * h_p
    bytes2 = (2 * (b_p * n_in_p + n_in_p * h_p + h_p * n_out_p)
              + 4 * (2 * h_p + b_p * n_out_p))
    out_p = pl.pallas_call(
        _apply_kernel,
        out_shape=jax.ShapeDtypeStruct((b_p, n_out_p), f32),
        grid=(num_tiles, nk),
        in_specs=[
            pl.BlockSpec((1, h_p), lambda i, k: (0, 0)),        # scale resident
            pl.BlockSpec((1, h_p), lambda i, k: (0, 0)),        # shift resident
            pl.BlockSpec((tb, tk), lambda i, k: (i, k)),        # x tile
            pl.BlockSpec((tk, h_p), lambda i, k: (k, 0)),       # W1 K-tile
            pl.BlockSpec((h_p, n_out_p), lambda i, k: (0, 0)),  # W2 resident (bf16)
        ],
        out_specs=pl.BlockSpec((tb, n_out_p), lambda i, k: (i, 0)),
        scratch_shapes=[pltpu.VMEM((tb, h_p), f32)],
        compiler_params=pltpu.CompilerParams(
            dimension_semantics=("parallel", "arbitrary"),
            vmem_limit_bytes=vmem_limit,
        ),
        cost_estimate=pl.CostEstimate(
            flops=flops2, transcendentals=0, bytes_accessed=bytes2),
    )(scale, shift, xp, w1p, w2p)

    return out_p[:B, :n_out]


def reference_forward(x, w1, gamma, beta, w2, eps=1e-5):
    h = x @ w1
    mean = jnp.mean(h, axis=0, keepdims=True)
    var = jnp.mean((h - mean) ** 2, axis=0, keepdims=True)
    h = (h - mean) / jnp.sqrt(var + eps)
    h = h * gamma + beta
    h = jnp.maximum(h, 0.0)
    return h @ w2


if __name__ == "__main__":
    # Small, deliberately non-aligned shapes so the test exercises feature
    # padding, K-tiling, multiple batch tiles and the 2-way phase-1 split.
    B, n_in, n_hidden, n_out = 30, 200, 96, 10

    key = jax.random.PRNGKey(0)
    kx, kw1, kw2, kg, kb = jax.random.split(key, 5)

    x = jax.random.normal(kx, (B, n_in), dtype=jnp.float32)
    w1 = jax.random.normal(kw1, (n_in, n_hidden), dtype=jnp.float32) * (1.0 / n_in ** 0.5)
    w2 = jax.random.normal(kw2, (n_hidden, n_out), dtype=jnp.float32) * (1.0 / n_hidden ** 0.5)
    gamma = (jnp.ones((1, n_hidden), dtype=jnp.float32)
             + 0.1 * jax.random.normal(kg, (1, n_hidden), dtype=jnp.float32))
    beta = 0.1 * jax.random.normal(kb, (1, n_hidden), dtype=jnp.float32)

    # Tiny tiles here only to exercise the tiling paths; defaults auto-size.
    out = mlp_forward(x, w1, gamma, beta, w2, batch_tile=8, k_tile=128)
    out = jax.block_until_ready(out)

    ref = reference_forward(x, w1, gamma, beta, w2)
    assert out.shape == (B, n_out)
    # bf16 MXU operands -> looser tolerance vs the pure-f32 reference.
    max_err = float(jnp.max(jnp.abs(out - ref)))
    assert jnp.allclose(out, ref, atol=5e-2, rtol=5e-2), f"max abs err {max_err}"

    print("KERNEL_OK")
</pallas_src>

<mosaic_0001>
module attributes {stable_mosaic.version = 11 : i64} {
  func.func @_stats_kernel(%arg0: i32, %arg1: i32, %arg2: i32, %arg3: memref<8x128xbf16, #tpu.memory_space<vmem>>, %arg4: memref<128x128xbf16, #tpu.memory_space<vmem>>, %arg5: memref<8x128xf32, #tpu.memory_space<vmem>>, %arg6: memref<8x128xf32, #tpu.memory_space<vmem>>, %arg7: memref<8x128xf32, #tpu.memory_space<vmem>>) attributes {dimension_semantics = [#tpu.dimension_semantics<parallel>, #tpu.dimension_semantics<arbitrary>, #tpu.dimension_semantics<arbitrary>], iteration_bounds = array<i64: 2, 2, 2>, scalar_prefetch = 0 : i64, scratch_operands = 1 : i64, tpu.core_type = #tpu.core_type<tc>, window_params = [{transform_indices = @transform_0, window_bounds = array<i64: 8, 128>}, {transform_indices = @transform_1, window_bounds = array<i64: 128, 128>}, {transform_indices = @transform_2, window_bounds = array<i64: 8, 128>}, {transform_indices = @transform_3, window_bounds = array<i64: 8, 128>}]} {
    %c0_i32 = arith.constant 0 : i32
    %0 = arith.cmpi eq, %arg2, %c0_i32 : i32
    %1 = arith.extui %0 : i1 to i32
    %c0_i32_0 = arith.constant 0 : i32
    %2 = arith.cmpi ne, %1, %c0_i32_0 : i32
    scf.if %2 {
      %cst_12 = arith.constant 0.000000e+00 : f32
      %17 = vector.broadcast %cst_12 : f32 to vector<8x128xf32>
      %c0_13 = arith.constant 0 : index
      %c0_14 = arith.constant 0 : index
      %18 = vector.load %arg7[%c0_13, %c0_14] : memref<8x128xf32, #tpu.memory_space<vmem>>, vector<8x128xf32>
      tpu.vector_store %arg7[%c0_13, %c0_14], %17 {strides = array<i32>} : memref<8x128xf32, #tpu.memory_space<vmem>>, vector<8x128xf32>,
    } else {
    }
    %c0 = arith.constant 0 : index
    %c0_1 = arith.constant 0 : index
    %3 = vector.load %arg7[%c0, %c0_1] : memref<8x128xf32, #tpu.memory_space<vmem>>, vector<8x128xf32>
    %c0_2 = arith.constant 0 : index
    %c0_3 = arith.constant 0 : index
    %4 = vector.load %arg3[%c0_2, %c0_3] : memref<8x128xbf16, #tpu.memory_space<vmem>>, vector<8x128xbf16>
    %c0_4 = arith.constant 0 : index
    %c0_5 = arith.constant 0 : index
    %5 = vector.load %arg4[%c0_4, %c0_5] : memref<128x128xbf16, #tpu.memory_space<vmem>>, vector<128x128xbf16>
    %cst = arith.constant dense<0.000000e+00> : vector<8x128xf32>
    %6 = tpu.matmul %4, %5, %cst {dimension_numbers = #tpu.dot_dimension_numbers<[1], [0], [0], [1], [0, 0, 1, 1], [], []>} : vector<8x128xbf16>, vector<128x128xbf16>, vector<8x128xf32> -> vector<8x128xf32>
    %7 = arith.addf %3, %6 : vector<8x128xf32>
    %c0_6 = arith.constant 0 : index
    %c0_7 = arith.constant 0 : index
    %8 = vector.load %arg7[%c0_6, %c0_7] : memref<8x128xf32, #tpu.memory_space<vmem>>, vector<8x128xf32>
    tpu.vector_store %arg7[%c0_6, %c0_7], %7 {strides = array<i32>} : memref<8x128xf32, #tpu.memory_space<vmem>>, vector<8x128xf32>,
    %c0_i32_8 = arith.constant 0 : i32
    %9 = arith.cmpi eq, %arg1, %c0_i32_8 : i32
    %c0_i32_9 = arith.constant 0 : i32
    %10 = arith.cmpi eq, %arg2, %c0_i32_9 : i32
    %11 = arith.andi %9, %10 : i1
    %12 = arith.extui %11 : i1 to i32
    %c0_i32_10 = arith.constant 0 : i32
    %13 = arith.cmpi ne, %12, %c0_i32_10 : i32
    scf.if %13 {
      %cst_12 = arith.constant 0.000000e+00 : f32
      %17 = vector.broadcast %cst_12 : f32 to vector<8x128xf32>
      %c0_13 = arith.constant 0 : index
      %c0_14 = arith.constant 0 : index
      %18 = vector.load %arg5[%c0_13, %c0_14] : memref<8x128xf32, #tpu.memory_space<vmem>>, vector<8x128xf32>
      tpu.vector_store %arg5[%c0_13, %c0_14], %17 {strides = array<i32>} : memref<8x128xf32, #tpu.memory_space<vmem>>, vector<8x128xf32>,
      %cst_15 = arith.constant 0.000000e+00 : f32
      %19 = vector.broadcast %cst_15 : f32 to vector<8x128xf32>
      %c0_16 = arith.constant 0 : index
      %c0_17 = arith.constant 0 : index
      %20 = vector.load %arg6[%c0_16, %c0_17] : memref<8x128xf32, #tpu.memory_space<vmem>>, vector<8x128xf32>
      tpu.vector_store %arg6[%c0_16, %c0_17], %19 {strides = array<i32>} : memref<8x128xf32, #tpu.memory_space<vmem>>, vector<8x128xf32>,
    } else {
    }
    %c1_i32 = arith.constant 1 : i32
    %14 = arith.cmpi eq, %arg2, %c1_i32 : i32
    %15 = arith.extui %14 : i1 to i32
    %c0_i32_11 = arith.constant 0 : i32
    %16 = arith.cmpi ne, %15, %c0_i32_11 : i32
    scf.if %16 {
      %c0_12 = arith.constant 0 : index
      %c0_13 = arith.constant 0 : index
      %17 = vector.load %arg7[%c0_12, %c0_13] : memref<8x128xf32, #tpu.memory_space<vmem>>, vector<8x128xf32>
      %18 = vector.shape_cast %17 : vector<8x128xf32> to vector<1x8x128xf32>
      %c0_14 = arith.constant 0 : index
      %c0_15 = arith.constant 0 : index
      %19 = vector.load %arg5[%c0_14, %c0_15] : memref<8x128xf32, #tpu.memory_space<vmem>>, vector<8x128xf32>
      %cst_16 = arith.constant dense<0.000000e+00> : vector<8x128xf32>
      %20 = vector.multi_reduction <add>, %18, %cst_16 [0] : vector<1x8x128xf32> to vector<8x128xf32>
      %21 = arith.addf %19, %20 : vector<8x128xf32>
      %c0_17 = arith.constant 0 : index
      %c0_18 = arith.constant 0 : index
      %22 = vector.load %arg5[%c0_17, %c0_18] : memref<8x128xf32, #tpu.memory_space<vmem>>, vector<8x128xf32>
      tpu.vector_store %arg5[%c0_17, %c0_18], %21 {strides = array<i32>} : memref<8x128xf32, #tpu.memory_space<vmem>>, vector<8x128xf32>,
      %c0_19 = arith.constant 0 : index
      %c0_20 = arith.constant 0 : index
      %23 = vector.load %arg6[%c0_19, %c0_20] : memref<8x128xf32, #tpu.memory_space<vmem>>, vector<8x128xf32>
      %24 = arith.mulf %18, %18 : vector<1x8x128xf32>
      %cst_21 = arith.constant dense<0.000000e+00> : vector<8x128xf32>
      %25 = vector.multi_reduction <add>, %24, %cst_21 [0] : vector<1x8x128xf32> to vector<8x128xf32>
      %26 = arith.addf %23, %25 : vector<8x128xf32>
      %c0_22 = arith.constant 0 : index
      %c0_23 = arith.constant 0 : index
      %27 = vector.load %arg6[%c0_22, %c0_23] : memref<8x128xf32, #tpu.memory_space<vmem>>, vector<8x128xf32>
      tpu.vector_store %arg6[%c0_22, %c0_23], %26 {strides = array<i32>} : memref<8x128xf32, #tpu.memory_space<vmem>>, vector<8x128xf32>,
    } else {
    }
    return
  }
  func.func @transform_0(%arg0: i32, %arg1: i32, %arg2: i32) -> (i32, i32) {
    %c2_i32 = arith.constant 2 : i32
    %0 = arith.muli %arg0, %c2_i32 : i32
    %1 = arith.addi %0, %arg1 : i32
    %c0_i32 = arith.constant 0 : i32
    return %1, %arg2 : i32, i32
  }
  func.func @transform_1(%arg0: i32, %arg1: i32, %arg2: i32) -> (i32, i32) {
    %c0_i32 = arith.constant 0 : i32
    %c0_i32_0 = arith.constant 0 : i32
    return %arg2, %c0_i32 : i32, i32
  }
  func.func @transform_2(%arg0: i32, %arg1: i32, %arg2: i32) -> (i32, i32) {
    %c0_i32 = arith.constant 0 : i32
    %c0_i32_0 = arith.constant 0 : i32
    return %arg0, %c0_i32 : i32, i32
  }
  func.func @transform_3(%arg0: i32, %arg1: i32, %arg2: i32) -> (i32, i32) {
    %c0_i32 = arith.constant 0 : i32
    %c0_i32_0 = arith.constant 0 : i32
    return %arg0, %c0_i32 : i32, i32
  }
}

</mosaic_0001>

<llo_original>
// kernel: tpu_custom_call.1
$region0: #{tpu_custom_call.1}
  #allocation0 [shape = 'u32[]', space=smem, size = 0x4, offset = 0x4, fixed_abs, tag = 'smem constant byte address 0x4 - core index']
  #allocation1 [shape = 'u32[144,128]{1,0:T(1,128)}', space=vmem, size = 0x12000, scoped, tag = 'internal scratch']
  #allocation2 [shape = 'f32[8,128]{1,0:T(8,128)}', space=vmem, size = 0x1000, scoped, tag = 'scratch operand']
  %s0 = inlined_call_operand.hbm [shape: bf16[32,256], index: 0, kind: input, shape index: {}]
  %s1 = inlined_call_operand.hbm [shape: bf16[256,128], index: 1, kind: input, shape index: {}]
  %s2 = inlined_call_operand.hbm [shape: f32[16,128], index: 2, kind: output, shape index: {0}]
  %s3 = inlined_call_operand.hbm [shape: f32[16,128], index: 3, kind: output, shape index: {1}]
  %4 = xla_tuple %s2, %s3
  %s5 = sld [smem:[#allocation0]]
  $region69: #{tpu_custom_call.1} parent=0
    _
  %s7 = ssub.s32 1, %s5
  %s8 = scalar_select 0, %s7, %s5
  $region1: #{tpu_custom_call.1} parent=0
    #allocation3 [shape = 'u8[4096]{0}', space=vmem, size = 0x1000, scoped, tag = 'input window, operand 0']
    #allocation4 [shape = 's32[2]{0}', space=sflag, size = 0x8, scoped, tag = 'scoped memory for tpu_custom_call.1']
    #allocation5 [shape = 's32[2]{0}', space=sflag, size = 0x8, scoped, tag = 'scoped memory for tpu_custom_call.1']
    #allocation6 [shape = 'u8[65536]{0}', space=vmem, size = 0x10000, scoped, tag = 'input window, operand 1']
    #allocation7 [shape = 's32[2]{0}', space=sflag, size = 0x8, scoped, tag = 'scoped memory for tpu_custom_call.1']
    #allocation8 [shape = 'u8[8192]{0}', space=vmem, size = 0x2000, scoped, tag = 'output window, operand 0']
    #allocation9 [shape = 'u8[8192]{0}', space=vmem, size = 0x2000, scoped, tag = 'output window, operand 1']
    #allocation10 [shape = 's32[2]{0}', space=sflag, size = 0x8, scoped, tag = 'scoped memory for tpu_custom_call.1']
    %9 = vsyncpa [#allocation4], 0
    %s10 = scalar_lea.sflag [#allocation4], 1
    %11 = vsyncpa %s10, 0
    %12 = vsyncpa [#allocation7], 0
    %s13 = scalar_lea.sflag [#allocation7], 1
    %14 = vsyncpa %s13, 0
    %15 = vsyncpa [#allocation5], 0
    %s16 = scalar_lea.sflag [#allocation5], 1
    %17 = vsyncpa %s16, 0
    %18 = vsyncpa [#allocation10], 0
    %s19 = scalar_lea.sflag [#allocation10], 1
    %20 = vsyncpa %s19, 0
    loop: start=0, step=1, limit=10
    $region2: #{tpu_custom_call.1} parent=1 // loop_pre_header
      _
    $region3: #{tpu_custom_call.1} parent=1 // loop_header
      %s22 = sphi 0, %s26
      %p23 = scmp.ge.s32.totalorder %s22, 10
      %s29 = sphi 0, %s48
      %s30 = sphi 0, %s44
      %s31 = sphi 0, %s40
      %s32 = sphi 0, %s29
      %s33 = sphi 0, %s30
      %s34 = sphi 0, %s31
      %s35 = sphi 0, %s32
      %s36 = sphi 0, %s33
      %s37 = sphi 0, %s34
      %s57 = sphi 0, %s59
      %s60 = sphi 0, %s57
      %s61 = sphi 0, %s60
      %s77 = sphi 0, %s61
      %s83 = sphi 0, %s85
      %s86 = sphi 0, %s83
      %s87 = sphi 0, %s86
      %s103 = sphi 0, %s87
      %s109 = sphi 0, %s111
      %s112 = sphi 0, %s109
      %s113 = sphi 0, %s112
      %s129 = sphi 0, %s113
      %s135 = sphi 0, %s137
      %s138 = sphi 0, %s135
      %s139 = sphi 0, %s138
      %s155 = sphi 0, %s139
    $region4: #{tpu_custom_call.1} parent=1 // loop_header_branch
      %25 = sbr.rel (%p23) target = $region8
    $region5: #{tpu_custom_call.1} parent=1 // loop_body
      %s27 = ssub.s32 %s22, 1
      %s28 = ssub.s32 %s22, 2
      %s38 = sadd.s32 1, %s31
      %p39 = scmp.ge.s32.totalorder %s38, 2
      %s40 = scalar_select %p39, 0, %s38
      %s41 = sadd.s32 1, %s30
      %s42 = scalar_select %p39, %s41, %s30
      %p43 = scmp.ge.s32.totalorder %s42, 2
      %s44 = scalar_select %p43, 0, %s42
      %s45 = sadd.s32 1, %s29
      %s46 = scalar_select %p43, %s45, %s29
      %p47 = scmp.ge.s32.totalorder %s46, 2
      %s48 = scalar_select %p47, 0, %s46
      %s49 = smul.u32 %s29, 2
      %s50 = sadd.s32 %s49, %s30
      %s51 = smul.u32 %s48, 2
      %s52 = sadd.s32 %s51, %s44
      %s53 = ssub.s32 %s50, %s52
      %s54 = ssub.s32 %s31, %s40
      %s55 = sor.u32 %s53, %s54
      %p56 = scmp.eq.s32.totalorder %s55, 0
      %s58 = sadd.s32 %s57, 1
      %s59 = scalar_select %p56, %s57, %s58
      %p62 = pneg %p56
      %p63 = scmp.eq.s32.totalorder %s22, 7
      %p64 = por %p62, %p63
      %p65 = scmp.ne.s32.totalorder %s57, %s60
      %p66 = scmp.eq.s32.totalorder %s22, 0
      %p67 = por %p65, %p66
      %p68 = scmp.ne.s32.totalorder %s57, %s60
      %p69 = scmp.eq.s32.totalorder %s27, 7
      %p70 = por %p68, %p69
      %p71 = scmp.ne.s32.totalorder %s60, %s61
      %p72 = scmp.eq.s32.totalorder %s27, 0
      %p73 = por %p71, %p72
      %p74 = scmp.ne.s32.totalorder %s60, %s61
      %p75 = scmp.eq.s32.totalorder %s28, 7
      %p76 = por %p74, %p75
      %p78 = scmp.ne.s32.totalorder %s61, %s77
      %p79 = scmp.eq.s32.totalorder %s28, 0
      %p80 = por %p78, %p79
      %s81 = ssub.s32 %s31, %s40
      %p82 = scmp.eq.s32.totalorder %s81, 0
      %s84 = sadd.s32 %s83, 1
      %s85 = scalar_select %p82, %s83, %s84
      %p88 = pneg %p82
      %p89 = scmp.eq.s32.totalorder %s22, 7
      %p90 = por %p88, %p89
      %p91 = scmp.ne.s32.totalorder %s83, %s86
      %p92 = scmp.eq.s32.totalorder %s22, 0
      %p93 = por %p91, %p92
      %p94 = scmp.ne.s32.totalorder %s83, %s86
      %p95 = scmp.eq.s32.totalorder %s27, 7
      %p96 = por %p94, %p95
      %p97 = scmp.ne.s32.totalorder %s86, %s87
      %p98 = scmp.eq.s32.totalorder %s27, 0
      %p99 = por %p97, %p98
      %p100 = scmp.ne.s32.totalorder %s86, %s87
      %p101 = scmp.eq.s32.totalorder %s28, 7
      %p102 = por %p100, %p101
      %p104 = scmp.ne.s32.totalorder %s87, %s103
      %p105 = scmp.eq.s32.totalorder %s28, 0
      %p106 = por %p104, %p105
      %s107 = ssub.s32 %s29, %s48
      %p108 = scmp.eq.s32.totalorder %s107, 0
      %s110 = sadd.s32 %s109, 1
      %s111 = scalar_select %p108, %s109, %s110
      %p114 = pneg %p108
      %p115 = scmp.eq.s32.totalorder %s22, 7
      %p116 = por %p114, %p115
      %p117 = scmp.ne.s32.totalorder %s109, %s112
      %p118 = scmp.eq.s32.totalorder %s22, 0
      %p119 = por %p117, %p118
      %p120 = scmp.ne.s32.totalorder %s109, %s112
      %p121 = scmp.eq.s32.totalorder %s27, 7
      %p122 = por %p120, %p121
      %p123 = scmp.ne.s32.totalorder %s112, %s113
      %p124 = scmp.eq.s32.totalorder %s27, 0
      %p125 = por %p123, %p124
      %p126 = scmp.ne.s32.totalorder %s112, %s113
      %p127 = scmp.eq.s32.totalorder %s28, 7
      %p128 = por %p126, %p127
      %p130 = scmp.ne.s32.totalorder %s113, %s129
      %p131 = scmp.eq.s32.totalorder %s28, 0
      %p132 = por %p130, %p131
      %s133 = ssub.s32 %s29, %s48
      %p134 = scmp.eq.s32.totalorder %s133, 0
      %s136 = sadd.s32 %s135, 1
      %s137 = scalar_select %p134, %s135, %s136
      %p140 = pneg %p134
      %p141 = scmp.eq.s32.totalorder %s22, 7
      %p142 = por %p140, %p141
      %p143 = scmp.ne.s32.totalorder %s135, %s138
      %p144 = scmp.eq.s32.totalorder %s22, 0
      %p145 = por %p143, %p144
      %p146 = scmp.ne.s32.totalorder %s135, %s138
      %p147 = scmp.eq.s32.totalorder %s27, 7
      %p148 = por %p146, %p147
      %p149 = scmp.ne.s32.totalorder %s138, %s139
      %p150 = scmp.eq.s32.totalorder %s27, 0
      %p151 = por %p149, %p150
      %p152 = scmp.ne.s32.totalorder %s138, %s139
      %p153 = scmp.eq.s32.totalorder %s28, 7
      %p154 = por %p152, %p153
      %p156 = scmp.ne.s32.totalorder %s139, %s155
      %p157 = scmp.eq.s32.totalorder %s28, 0
      %p158 = por %p156, %p157
      %p159 = scmp.le.s32.totalorder 1, %s22
      %p160 = scmp.lt.s32.totalorder %s22, 9
      %p161 = pnand %p159, %p160
      %p162 = pneg %p161
      // Predicated region
      $region9: #{tpu_custom_call.1} parent=5 // pred_check
        _
      $region10: #{tpu_custom_call.1} parent=5 // pred_check_branch
        %164 = sbr.rel (%p161) target = $region12
      $region11: #{tpu_custom_call.1} parent=5 // pred_region
        %s165 = ssub.s32 %s22, 1
      $region12: #{tpu_custom_call.1} parent=5 // pred_fallthru
        _
      %p166 = scmp.lt.s32.totalorder %s22, 8
      // Predicated region
      $region13: #{tpu_custom_call.1} parent=5 // pred_check
        %p167 = pneg %p166
      $region14: #{tpu_custom_call.1} parent=5 // pred_check_branch
        %169 = sbr.rel (%p167) target = $region16
      $region15: #{tpu_custom_call.1} parent=5 // pred_region
        // Predicated region
        $region17: #{tpu_custom_call.1} parent=15 // pred_check
          %p170 = pneg %p67
        $region18: #{tpu_custom_call.1} parent=15 // pred_check_branch
          %172 = sbr.rel (%p170) target = $region20
        $region19: #{tpu_custom_call.1} parent=15 // pred_region
          %s173 = sand.u32 %s57, 1
          %s174 = scalar_lea.sflag [#allocation4], %s173
          %s175 = sand.u32 %s57, 1
          %s176 = smul.addr %s175, 4
          %s177 = scalar_lea.vmem [#allocation3], %s176
          %s178 = smul.u32 %s29, 2
          %s179 = sadd.s32 %s178, %s30
          %s181 = ssub.s32 64, 64
          %182 = vsyncadd %s174, %s181
          %s183 = smul.addr %s179, 2
          %s184 = sadd.s32 %s31, %s183
          %s185 = smul.addr %s184, 64
          %s186 = scalar_lea.hbm %s0, %s185
          %s188 = sshll.u32 %s177, 4
          %s189 = int_to_ptr.vmem [resolvable:$true] %s188
          %191 = dma.hbm_to_vmem [thread:$0]  %s186, 64, %s189, %s174
        $region20: #{tpu_custom_call.1} parent=15 // pred_fallthru
          _
        // Predicated region
        $region21: #{tpu_custom_call.1} parent=15 // pred_check
          %p192 = pneg %p93
        $region22: #{tpu_custom_call.1} parent=15 // pred_check_branch
          %194 = sbr.rel (%p192) target = $region24
        $region23: #{tpu_custom_call.1} parent=15 // pred_region
          %s195 = sand.u32 %s83, 1
          %s196 = scalar_lea.sflag [#allocation7], %s195
          %s197 = sand.u32 %s83, 1
          %s198 = smul.addr %s197, 64
          %s199 = scalar_lea.vmem [#allocation6], %s198
          %s200 = smul.u32 16, %s31
          %s202 = ssub.s32 1024, 1024
          %203 = vsyncadd %s196, %s202
          %s204 = smul.addr %s200, 64
          %s205 = scalar_lea.hbm %s1, %s204
          %s206 = sshll.u32 %s199, 4
          %s207 = int_to_ptr.vmem [resolvable:$true] %s206
          %212 = dma.hbm_to_vmem [thread:$0]  %s205, 1024, %s207, %s196, 64, 64, 4
        $region24: #{tpu_custom_call.1} parent=15 // pred_fallthru
          _
      $region16: #{tpu_custom_call.1} parent=5 // pred_fallthru
        _
      %p213 = scmp.le.s32.totalorder 1, %s22
      %p214 = scmp.lt.s32.totalorder %s22, 9
      %p215 = pnand %p213, %p214
      %p216 = pneg %p215
      // Predicated region
      $region25: #{tpu_custom_call.1} parent=5 // pred_check
        _
      $region26: #{tpu_custom_call.1} parent=5 // pred_check_branch
        %218 = sbr.rel (%p215) target = $region28
      $region27: #{tpu_custom_call.1} parent=5 // pred_region
        %s219 = ssub.s32 %s22, 1
        %s220 = sand.u32 %s60, 1
        %s221 = scalar_lea.sflag [#allocation4], %s220
        %s222 = sand.u32 %s60, 1
        %s223 = smul.addr %s222, 4
        %s224 = scalar_lea.vmem [#allocation3], %s223
        // Predicated region
        $region29: #{tpu_custom_call.1} parent=27 // pred_check
          %p225 = pneg %p73
        $region30: #{tpu_custom_call.1} parent=27 // pred_check_branch
          %227 = sbr.rel (%p225) target = $region32
        $region31: #{tpu_custom_call.1} parent=27 // pred_region
          %228 = dma.done %s221, 64
        $region32: #{tpu_custom_call.1} parent=27 // pred_fallthru
          _
        %s229 = sand.u32 %s86, 1
        %s230 = scalar_lea.sflag [#allocation7], %s229
        %s231 = sand.u32 %s86, 1
        %s232 = smul.addr %s231, 64
        %s233 = scalar_lea.vmem [#allocation6], %s232
        // Predicated region
        $region33: #{tpu_custom_call.1} parent=27 // pred_check
          %p234 = pneg %p99
        $region34: #{tpu_custom_call.1} parent=27 // pred_check_branch
          %236 = sbr.rel (%p234) target = $region36
        $region35: #{tpu_custom_call.1} parent=27 // pred_region
          %237 = dma.done %s230, 1024
        $region36: #{tpu_custom_call.1} parent=27 // pred_fallthru
          _
        %s238 = sand.u32 %s60, 1
        %s239 = scalar_lea.sflag [#allocation4], %s238
        %s240 = sand.u32 %s60, 1
        %s241 = smul.addr %s240, 4
        %s242 = scalar_lea.vmem [#allocation3], %s241
        %p243 = pneg %p73
        %p244 = pneg %p70
        %s245 = sand.u32 %s86, 1
        %s246 = scalar_lea.sflag [#allocation7], %s245
        %s247 = sand.u32 %s86, 1
        %s248 = smul.addr %s247, 64
        %s249 = scalar_lea.vmem [#allocation6], %s248
        %p250 = pneg %p99
        %p251 = pneg %p96
        %p252 = pneg %p125
        %p253 = pneg %p122
        %s254 = sand.u32 %s112, 1
        %s255 = scalar_lea.sflag [#allocation5], %s254
        %s256 = sand.u32 %s112, 1
        %s257 = smul.addr %s256, 8
        %s258 = scalar_lea.vmem [#allocation8], %s257
        %p259 = pneg %p151
        %p260 = pneg %p148
        %s261 = sand.u32 %s138, 1
        %s262 = scalar_lea.sflag [#allocation10], %s261
        %s263 = sand.u32 %s138, 1
        %s264 = smul.addr %s263, 8
        %s265 = scalar_lea.vmem [#allocation9], %s264
        %s266 = smul.u32 %s32, 2
        %s267 = sadd.s32 %s266, %s33
        %s268 = smul.u32 16, %s34
        %p270 = scmp.eq.s32.totalorder %s34, 0
        // Predicated region
        $region37: #{tpu_custom_call.1} parent=27 // pred_check
          %p271 = pneg %p270
        $region38: #{tpu_custom_call.1} parent=27 // pred_check_branch
          %273 = sbr.rel (%p271) target = $region40
        $region39: #{tpu_custom_call.1} parent=27 // pred_region
          %274 = vst [vmem:[#allocation2] sm:$0xff] 0.0
        $region40: #{tpu_custom_call.1} parent=27 // pred_fallthru
          _
        %v275 = vld [vmem:[#allocation2] sm:$0xff]
        %v276 = vld [vmem:[%s224] sm:$0xf]
        %v277 = vld [vmem:[%s233] sm:$0xf]
        %v278 = vld [vmem:[%s233 + $0x4] sm:$0xf]
        %v279 = vld [vmem:[%s233 + $0x8] sm:$0xf]
        %v280 = vld [vmem:[%s233 + $0xc] sm:$0xf]
        %v281 = vld [vmem:[%s233 + $0x10] sm:$0xf]
        %v282 = vld [vmem:[%s233 + $0x14] sm:$0xf]
        %v283 = vld [vmem:[%s233 + $0x18] sm:$0xf]
        %v284 = vld [vmem:[%s233 + $0x1c] sm:$0xf]
        %v285 = vld [vmem:[%s233 + $0x20] sm:$0xf]
        %v286 = vld [vmem:[%s233 + $0x24] sm:$0xf]
        %v287 = vld [vmem:[%s233 + $0x28] sm:$0xf]
        %v288 = vld [vmem:[%s233 + $0x2c] sm:$0xf]
        %v289 = vld [vmem:[%s233 + $0x30] sm:$0xf]
        %v290 = vld [vmem:[%s233 + $0x34] sm:$0xf]
        %v291 = vld [vmem:[%s233 + $0x38] sm:$0xf]
        %v292 = vld [vmem:[%s233 + $0x3c] sm:$0xf]
        %v309 = vunpack.c.l.b16 %v277
        %v310 = vunpack.c.l.b16 %v278
        %v311 = vunpack.c.l.b16 %v279
        %v312 = vunpack.c.l.b16 %v280
        %v313 = vunpack.c.l.b16 %v281
        %v314 = vunpack.c.l.b16 %v282
        %v315 = vunpack.c.l.b16 %v283
        %v316 = vunpack.c.l.b16 %v284
        %v317 = vunpack.c.l.b16 %v285
        %v318 = vunpack.c.l.b16 %v286
        %v319 = vunpack.c.l.b16 %v287
        %v320 = vunpack.c.l.b16 %v288
        %v321 = vunpack.c.l.b16 %v289
        %v322 = vunpack.c.l.b16 %v290
        %v323 = vunpack.c.l.b16 %v291
        %v324 = vunpack.c.l.b16 %v292
        %v325 = vpack.c.b16 %v310, %v309
        %v326 = vpack.c.b16 %v312, %v311
        %v327 = vpack.c.b16 %v314, %v313
        %v328 = vpack.c.b16 %v316, %v315
        %v329 = vpack.c.b16 %v318, %v317
        %v330 = vpack.c.b16 %v320, %v319
        %v331 = vpack.c.b16 %v322, %v321
        %v332 = vpack.c.b16 %v324, %v323
        %341 = vmatprep.subr.bf16.mxu0 0
        %342 = vmatpush1.bf16.msra.mxu0 %v325
        %343 = vmatprep.subr.bf16.mxu0 0
        %344 = vmatpush1.bf16.msra.mxu0 %v326
        %345 = vmatprep.subr.bf16.mxu0 0
        %346 = vmatpush1.bf16.msra.mxu0 %v327
        %347 = vmatprep.subr.bf16.mxu0 0
        %348 = vmatpush1.bf16.msra.mxu0 %v328
        %349 = vmatprep.subr.bf16.mxu0 0
        %350 = vmatpush1.bf16.msra.mxu0 %v329
        %351 = vmatprep.subr.bf16.mxu0 0
        %352 = vmatpush1.bf16.msra.mxu0 %v330
        %353 = vmatprep.subr.bf16.mxu0 0
        %354 = vmatpush1.bf16.msra.mxu0 %v331
        %355 = vmatprep.subr.bf16.mxu0 0
        %356 = vmatpush1.bf16.msra.mxu0 %v332
        %357 = vmatprep.subr.bf16.mxu0 0
        %358 = vmatpush1.bf16.msra.mxu0 0
        %359 = vmatprep.subr.bf16.mxu0 0
        %360 = vmatpush1.bf16.msra.mxu0 0
        %361 = vmatprep.subr.bf16.mxu0 0
        %362 = vmatpush1.bf16.msra.mxu0 0
        %363 = vmatprep.subr.bf16.mxu0 0
        %364 = vmatpush1.bf16.msra.mxu0 0
        %365 = vmatprep.subr.bf16.mxu0 0
        %366 = vmatpush1.bf16.msra.mxu0 0
        %367 = vmatprep.subr.bf16.mxu0 0
        %368 = vmatpush1.bf16.msra.mxu0 0
        %369 = vmatprep.subr.bf16.mxu0 0
        %370 = vmatpush1.bf16.msra.mxu0 0
        %371 = vmatprep.subr.bf16.mxu0 0
        %372 = vmatpush1.bf16.msra.mxu0 0
        %373 = vmatprep.mubr.bf16.mxu0 0
        %374 = vmatmul.mubr.bf16.gmra.mrb[0].mxu0 %v276
        %v375 = vpop.f32.mrb[0].mxu0
        %v376 = vadd.f32 0.0, %v375
        %v377 = vpop.f32.mrb[0].mxu0
        %v378 = vpop.f32.mrb[0].mxu0
        %v379 = vpop.f32.mrb[0].mxu0
        %380 = vdwg.mxu0
        %v381 = vadd.f32 %v275, %v376
        %382 = vst [vmem:[#allocation2] sm:$0xff] %v381
        %p383 = scmp.eq.s32.totalorder %s33, 0
        %p384 = pnand %p383, %p270
        %p385 = pneg %p384
        // Predicated region
        $region41: #{tpu_custom_call.1} parent=27 // pred_check
          _
        $region42: #{tpu_custom_call.1} parent=27 // pred_check_branch
          %387 = sbr.rel (%p384) target = $region44
        $region43: #{tpu_custom_call.1} parent=27 // pred_region
          %388 = vst [vmem:[%s258] sm:$0xff] 0.0
          %389 = vst [vmem:[%s265] sm:$0xff] 0.0
        $region44: #{tpu_custom_call.1} parent=27 // pred_fallthru
          _
        %p390 = scmp.eq.s32.totalorder %s34, 1
        // Predicated region
        $region45: #{tpu_custom_call.1} parent=27 // pred_check
          %p391 = pneg %p390
        $region46: #{tpu_custom_call.1} parent=27 // pred_check_branch
          %393 = sbr.rel (%p391) target = $region48
        $region47: #{tpu_custom_call.1} parent=27 // pred_region
          %v394 = vld [vmem:[#allocation2] sm:$0xff]
          %v395 = vld [vmem:[%s258] sm:$0xff]
          %v396 = vadd.f32 %v394, 0.0
          %v397 = vadd.f32 %v395, %v396
          %398 = vst [vmem:[%s258] sm:$0xff] %v397
          %v399 = vld [vmem:[%s265] sm:$0xff]
          %v400 = vmul.f32 %v394, %v394
          %v401 = vadd.f32 %v400, 0.0
          %v402 = vadd.f32 %v399, %v401
          %403 = vst [vmem:[%s265] sm:$0xff] %v402
        $region48: #{tpu_custom_call.1} parent=27 // pred_fallthru
          _
        %s404 = sand.u32 %s112, 1
        %s405 = scalar_lea.sflag [#allocation5], %s404
        %s406 = sand.u32 %s112, 1
        %s407 = smul.addr %s406, 8
        %s408 = scalar_lea.vmem [#allocation8], %s407
        %s409 = sand.u32 %s138, 1
        %s410 = scalar_lea.sflag [#allocation10], %s409
        %s411 = sand.u32 %s138, 1
        %s412 = smul.addr %s411, 8
        %s413 = scalar_lea.vmem [#allocation9], %s412
        // Predicated region
        $region49: #{tpu_custom_call.1} parent=27 // pred_check
          %p414 = pneg %p122
        $region50: #{tpu_custom_call.1} parent=27 // pred_check_branch
          %416 = sbr.rel (%p414) target = $region52
        $region51: #{tpu_custom_call.1} parent=27 // pred_region
          %s418 = ssub.s32 128, 128
          %419 = vsyncadd %s405, %s418
          %s420 = smul.addr %s32, 128
          %s421 = scalar_lea.hbm %s2, %s420
          %s423 = sshll.u32 %s408, 4
          %s424 = int_to_ptr.vmem [resolvable:$true] %s423
          %426 = dma.vmem_to_hbm [thread:$0]  %s424, 128, %s421, %s405
        $region52: #{tpu_custom_call.1} parent=27 // pred_fallthru
          _
        // Predicated region
        $region53: #{tpu_custom_call.1} parent=27 // pred_check
          %p427 = pneg %p148
        $region54: #{tpu_custom_call.1} parent=27 // pred_check_branch
          %429 = sbr.rel (%p427) target = $region56
        $region55: #{tpu_custom_call.1} parent=27 // pred_region
          %s431 = ssub.s32 128, 128
          %432 = vsyncadd %s410, %s431
          %s433 = smul.addr %s32, 128
          %s434 = scalar_lea.hbm %s3, %s433
          %s436 = sshll.u32 %s413, 4
          %s437 = int_to_ptr.vmem [resolvable:$true] %s436
          %439 = dma.vmem_to_hbm [thread:$0]  %s437, 128, %s434, %s410
        $region56: #{tpu_custom_call.1} parent=27 // pred_fallthru
          _
      $region28: #{tpu_custom_call.1} parent=5 // pred_fallthru
        _
      %p440 = scmp.le.s32.totalorder 2, %s22
      // Predicated region
      $region57: #{tpu_custom_call.1} parent=5 // pred_check
        %p441 = pneg %p440
      $region58: #{tpu_custom_call.1} parent=5 // pred_check_branch
        %443 = sbr.rel (%p441) target = $region60
      $region59: #{tpu_custom_call.1} parent=5 // pred_region
        %s444 = ssub.s32 %s22, 2
        // Predicated region
        $region61: #{tpu_custom_call.1} parent=59 // pred_check
          %p445 = pneg %p128
        $region62: #{tpu_custom_call.1} parent=59 // pred_check_branch
          %447 = sbr.rel (%p445) target = $region64
        $region63: #{tpu_custom_call.1} parent=59 // pred_region
          %s448 = sand.u32 %s113, 1
          %s449 = scalar_lea.sflag [#allocation5], %s448
          %s450 = sand.u32 %s113, 1
          %s451 = smul.addr %s450, 8
          %s452 = scalar_lea.vmem [#allocation8], %s451
          %453 = dma.done %s449, 128
        $region64: #{tpu_custom_call.1} parent=59 // pred_fallthru
          _
        // Predicated region
        $region65: #{tpu_custom_call.1} parent=59 // pred_check
          %p454 = pneg %p154
        $region66: #{tpu_custom_call.1} parent=59 // pred_check_branch
          %456 = sbr.rel (%p454) target = $region68
        $region67: #{tpu_custom_call.1} parent=59 // pred_region
          %s457 = sand.u32 %s139, 1
          %s458 = scalar_lea.sflag [#allocation10], %s457
          %s459 = sand.u32 %s139, 1
          %s460 = smul.addr %s459, 8
          %s461 = scalar_lea.vmem [#allocation9], %s460
          %462 = dma.done %s458, 128
        $region68: #{tpu_custom_call.1} parent=59 // pred_fallthru
          _
      $region60: #{tpu_custom_call.1} parent=5 // pred_fallthru
        _
    $region6: #{tpu_custom_call.1} parent=1 // loop_footer
      %s26 = sadd.s32 1, %s22
    $region7: #{tpu_custom_call.1} parent=1 // loop_footer_branch
      %21 = sbr.rel target = $region3
    $region8: #{tpu_custom_call.1} parent=1 // loop_exit
      _
    %463 = vsyncpa [#allocation4], 1
    %s464 = scalar_lea.sflag [#allocation4], 1
    %465 = vsyncpa %s464, 1
    %466 = vsyncpa [#allocation7], 1
    %s467 = scalar_lea.sflag [#allocation7], 1
    %468 = vsyncpa %s467, 1
    %469 = vsyncpa [#allocation5], 1
    %s470 = scalar_lea.sflag [#allocation5], 1
    %471 = vsyncpa %s470, 1
    %472 = vsyncpa [#allocation10], 1
    %s473 = scalar_lea.sflag [#allocation10], 1
    %474 = vsyncpa %s473, 1

</llo_original>
